<compile_context>
chip_gen: v6e
topology: v6e:2x2x1
jax: 0.10.0
libtpu: 0.0.40
codegen_flags: <defaults>
</compile_context>

<pallas_src>
import functools

import jax
import jax.numpy as jnp
from jax.experimental import pallas as pl
from jax.experimental.pallas import tpu as pltpu

_LANES = 128
_TARGET_BLOCK_BYTES = 4 * 1024 * 1024   # ~4 MiB per operand per buffer


def _sublane_min(dtype) -> int:
    """Native sublane packing: 8 for 32-bit, 16 for 16-bit, 32 for 8-bit dtypes."""
    bits = jnp.dtype(dtype).itemsize * 8
    return max(8, 256 // bits)


@functools.lru_cache(maxsize=1)
def _num_tensorcores() -> int:
    """Best-effort TensorCores-per-chip (v7x == 2, v5e/v6e == 1); safe fallback 1."""
    try:
        info = pltpu.get_tpu_info()
        for attr in ("tensorcores_per_chip", "num_tensorcores", "num_cores",
                     "cores_per_chip", "core_count"):
            v = getattr(info, attr, None)
            if isinstance(v, int) and 0 < v <= 8:
                return v
    except Exception:
        pass
    try:
        kind = jax.devices()[0].device_kind.lower()
        if "v7" in kind:
            return 2
    except Exception:
        pass
    return 1


def _mish_kernel(x_ref, o_ref, *, approx_recip: bool):
    # mish(x) = x * tanh(softplus(x)).  With t = e^x (exact algebra):
    #   tanh(log1p(t)) = t*(t+2) / (t*(t+2) + 2)
    # Clamp x at 20 before exp: for x >= 20 the ratio rounds to 1.0 in f32
    # (so mish(x) == x) and the clamp prevents exp overflow -> inf/inf = NaN.
    xf = x_ref[...].astype(jnp.float32)
    t = jnp.exp(jnp.minimum(xf, 20.0))
    u = t * (t + 2.0)
    if approx_recip:
        # EUP vrcp (~2^-12 rel err): only used when the output dtype is
        # narrower than f32, so the error is below output precision.
        ratio = u * pl.reciprocal(u + 2.0, approx=True)
    else:
        ratio = u / (u + 2.0)
    o_ref[...] = (xf * ratio).astype(o_ref.dtype)


def mish(x: jax.Array, *, target_block_bytes: int = _TARGET_BLOCK_BYTES,
         donate: bool = False) -> jax.Array:
    """Elementwise Mish: x * tanh(softplus(x)). Any shape, float dtype."""
    orig_shape = x.shape
    dtype = x.dtype
    total = x.size
    if total == 0:
        return x

    itemsize = jnp.dtype(dtype).itemsize
    sub = _sublane_min(dtype)

    # Lane-dense (rows, 128) slab.  Pad only up to the next 128-multiple
    # (< 128 extra elements); for 128-aligned sizes this is a pure reshape.
    x_flat = x.reshape(-1)
    padded = pl.cdiv(total, _LANES) * _LANES
    if padded != total:
        x_flat = jnp.pad(x_flat, (0, padded - total))
    rows = padded // _LANES
    x2d = x_flat.reshape(rows, _LANES)

    # Byte-based tile: ~4 MiB per operand per buffer regardless of dtype.
    target_rows = max(sub, target_block_bytes // (_LANES * itemsize))
    tile_rows = min(target_rows, rows)
    tile_rows = max(sub, (tile_rows // sub) * sub)

    # Split a single-block-sized tensor only when the chip actually has >= 2
    # TensorCores (v7x); on single-TC v5e/v6e the extra step is pure overhead.
    n_tc = _num_tensorcores()
    if n_tc >= 2 and rows > sub and pl.cdiv(rows, tile_rows) < n_tc:
        tile_rows = max(sub, ((pl.cdiv(rows, n_tc) + sub - 1) // sub) * sub)

    grid = (pl.cdiv(rows, tile_rows),)       # partial last block is masked

    approx_recip = jnp.issubdtype(dtype, jnp.floating) and itemsize < 4
    kernel = functools.partial(_mish_kernel, approx_recip=approx_recip)

    out2d = pl.pallas_call(
        kernel,
        out_shape=jax.ShapeDtypeStruct((rows, _LANES), dtype),
        grid_spec=pltpu.PrefetchScalarGridSpec(
            num_scalar_prefetch=0,
            grid=grid,
            in_specs=[pl.BlockSpec((tile_rows, _LANES), lambda i: (i, 0))],
            out_specs=pl.BlockSpec((tile_rows, _LANES), lambda i: (i, 0)),
        ),
        compiler_params=pltpu.CompilerParams(
            dimension_semantics=("parallel",),
            vmem_limit_bytes=32 * 1024 * 1024,
        ),
        cost_estimate=pl.CostEstimate(
            flops=7 * padded,
            transcendentals=2 * padded,       # exp + reciprocal/divide
            bytes_accessed=2 * padded * itemsize,
        ),
        # Opt-in aliasing: capacity/allocator win only (still 1 read + 1 write)
        # and it can force an XLA copy when the caller reuses x.
        input_output_aliases=({0: 0} if donate else {}),
    )(x2d)

    y = out2d.reshape(-1)
    if padded != total:
        y = y[:total]                        # slice only the output
    return y.reshape(orig_shape)


def _mish_ref(x):
    xf = x.astype(jnp.float32)
    return (xf * jnp.tanh(jax.nn.softplus(xf))).astype(x.dtype)


if __name__ == "__main__":
    key = jax.random.PRNGKey(0)
    # NCHW (PyTorch convention): batch=2, channels=4, spatial=16x16
    x = jax.random.normal(key, (2, 4, 16, 16), dtype=jnp.float32) * 3.0

    y = jax.block_until_ready(mish(x))
    y_ref = _mish_ref(x)
    assert y.shape == x.shape and y.dtype == x.dtype
    assert jnp.allclose(y, y_ref, atol=1e-5, rtol=1e-5)

    # Unaligned size (total % 128 != 0) exercises the pad + output-slice path.
    x2 = jax.random.normal(jax.random.PRNGKey(1), (3, 5, 7, 11), dtype=jnp.float32) * 3.0
    y2 = jax.block_until_ready(mish(x2))
    assert jnp.allclose(y2, _mish_ref(x2), atol=1e-5, rtol=1e-5)

    # bf16 path (approx EUP reciprocal, looser dtype-appropriate tolerance).
    x3 = (jax.random.normal(jax.random.PRNGKey(2), (2, 4, 16, 16)) * 3.0).astype(jnp.bfloat16)
    y3 = jax.block_until_ready(mish(x3))
    assert jnp.allclose(y3.astype(jnp.float32), _mish_ref(x3).astype(jnp.float32),
                        atol=2e-2, rtol=2e-2)

    print("KERNEL_OK")
</pallas_src>

<mosaic_0001>
module attributes {stable_mosaic.version = 11 : i64} {
  func.func @_mish_kernel(%arg0: i32, %arg1: memref<16x128xf32, #tpu.memory_space<vmem>>, %arg2: memref<16x128xf32, #tpu.memory_space<vmem>>) attributes {dimension_semantics = [#tpu.dimension_semantics<parallel>], iteration_bounds = array<i64: 1>, scalar_prefetch = 0 : i64, scratch_operands = 0 : i64, tpu.core_type = #tpu.core_type<tc>, window_params = [{transform_indices = @transform_0, window_bounds = array<i64: 16, 128>}, {transform_indices = @transform_1, window_bounds = array<i64: 16, 128>}]} {
    %c0 = arith.constant 0 : index
    %c0_0 = arith.constant 0 : index
    %0 = vector.load %arg1[%c0, %c0_0] : memref<16x128xf32, #tpu.memory_space<vmem>>, vector<16x128xf32>
    %cst = arith.constant 2.000000e+01 : f32
    %1 = vector.broadcast %cst : f32 to vector<16x128xf32>
    %2 = arith.minimumf %0, %1 : vector<16x128xf32>
    %3 = math.exp %2 : vector<16x128xf32>
    %cst_1 = arith.constant 2.000000e+00 : f32
    %4 = vector.broadcast %cst_1 : f32 to vector<16x128xf32>
    %5 = arith.addf %3, %4 : vector<16x128xf32>
    %6 = arith.mulf %3, %5 : vector<16x128xf32>
    %cst_2 = arith.constant 2.000000e+00 : f32
    %7 = vector.broadcast %cst_2 : f32 to vector<16x128xf32>
    %8 = arith.addf %6, %7 : vector<16x128xf32>
    %9 = arith.divf %6, %8 : vector<16x128xf32>
    %10 = arith.mulf %0, %9 : vector<16x128xf32>
    %c0_3 = arith.constant 0 : index
    %c0_4 = arith.constant 0 : index
    %11 = vector.load %arg2[%c0_3, %c0_4] : memref<16x128xf32, #tpu.memory_space<vmem>>, vector<16x128xf32>
    tpu.vector_store %arg2[%c0_3, %c0_4], %10 {strides = array<i32>} : memref<16x128xf32, #tpu.memory_space<vmem>>, vector<16x128xf32>,
    return
  }
  func.func @transform_0(%arg0: i32) -> (i32, i32) {
    %c0_i32 = arith.constant 0 : i32
    %c0_i32_0 = arith.constant 0 : i32
    return %arg0, %c0_i32 : i32, i32
  }
  func.func @transform_1(%arg0: i32) -> (i32, i32) {
    %c0_i32 = arith.constant 0 : i32
    %c0_i32_0 = arith.constant 0 : i32
    return %arg0, %c0_i32 : i32, i32
  }
}

</mosaic_0001>

<llo_original>
// kernel: tpu_custom_call.1
$region0: #{tpu_custom_call.1}
  #allocation0 [shape = 'u32[]', space=smem, size = 0x4, offset = 0x4, fixed_abs, tag = 'smem constant byte address 0x4 - core index']
  #allocation1 [shape = 'u32[144,128]{1,0:T(1,128)}', space=vmem, size = 0x12000, scoped, tag = 'internal scratch']
  %s0 = inlined_call_operand.hbm [shape: f32[16,128], index: 0, kind: input, shape index: {}]
  %s1 = inlined_call_operand.hbm [shape: f32[16,128], index: 1, kind: output, shape index: {}]
  %s2 = sld [smem:[#allocation0]]
  $region18: #{tpu_custom_call.1} parent=0
    _
  %s4 = ssub.s32 1, %s2
  %s5 = scalar_select 0, %s4, %s2
  $region1: #{tpu_custom_call.1} parent=0
    #allocation2 [shape = 'u8[8192]{0}', space=vmem, size = 0x2000, scoped, tag = 'input window, operand 0, single buffered']
    #allocation3 [shape = 's32[1]{0}', space=sflag, size = 0x4, scoped, tag = 'scoped memory for tpu_custom_call.1']
    #allocation4 [shape = 's32[1]{0}', space=sflag, size = 0x4, scoped, tag = 'scoped memory for tpu_custom_call.1']
    #allocation5 [shape = 'u8[8192]{0}', space=vmem, size = 0x2000, scoped, tag = 'output window, operand 0, single buffered']
    %6 = vsyncpa [#allocation3], 0
    %7 = vsyncpa [#allocation4], 0
    // Predicated region
    $region2: #{tpu_custom_call.1} parent=1 // pred_check
      _
    $region3: #{tpu_custom_call.1} parent=1 // pred_check_branch
      %9 = sbr.rel (0) target = $region5
    $region4: #{tpu_custom_call.1} parent=1 // pred_region
      %s11 = ssub.s32 256, 256
      %12 = vsyncadd [#allocation3], %s11
      %s13 = sshll.u32 [#allocation2], 4
      %s14 = int_to_ptr.vmem [resolvable:$true] %s13
      %19 = dma.hbm_to_vmem [thread:$0]  %s0, 256, %s14, [#allocation3], 128, 128, 8
    $region5: #{tpu_custom_call.1} parent=1 // pred_fallthru
      _
    // Predicated region
    $region6: #{tpu_custom_call.1} parent=1 // pred_check
      _
    $region7: #{tpu_custom_call.1} parent=1 // pred_check_branch
      %21 = sbr.rel (0) target = $region9
    $region8: #{tpu_custom_call.1} parent=1 // pred_region
      %22 = dma.done [#allocation3], 256
    $region9: #{tpu_custom_call.1} parent=1 // pred_fallthru
      _
    %v23 = vld [vmem:[#allocation2] sm:$0xff]
    %v24 = vld [vmem:[#allocation2 + $0x8] sm:$0xff]
    %v25 = vmin.f32 %v23, 20.0
    %v26 = vmin.f32 %v24, 20.0
    %v27 = vmul.f32 %v25, 1.442695
    %v28 = vpow.pop %v27
    %v29 = vmul.f32 %v26, 1.442695
    %v30 = vpow.pop %v29
    %v31 = vadd.f32 %v28, 2.0
    %v32 = vadd.f32 %v30, 2.0
    %v33 = vmul.f32 %v28, %v31
    %v34 = vmul.f32 %v30, %v32
    %v35 = vadd.f32 %v33, 2.0
    %v36 = vadd.f32 %v34, 2.0
    %v37 = vrcp.pop %v35
    %v38 = vmul.f32 %v33, %v37
    %v39 = vrcp.pop %v36
    %v40 = vmul.f32 %v34, %v39
    %v41 = vmul.f32 %v23, %v38
    %v42 = vmul.f32 %v24, %v40
    %43 = vst [vmem:[#allocation5] sm:$0xff] %v41
    %44 = vst [vmem:[#allocation5 + $0x8] sm:$0xff] %v42
    // Predicated region
    $region10: #{tpu_custom_call.1} parent=1 // pred_check
      _
    $region11: #{tpu_custom_call.1} parent=1 // pred_check_branch
      %46 = sbr.rel (0) target = $region13
    $region12: #{tpu_custom_call.1} parent=1 // pred_region
      %s48 = ssub.s32 256, 256
      %49 = vsyncadd [#allocation4], %s48
      %s50 = sshll.u32 [#allocation5], 4
      %s51 = int_to_ptr.vmem [resolvable:$true] %s50
      %56 = dma.vmem_to_hbm [thread:$0]  %s51, 256, %s1, [#allocation4], 128, 128, 8
    $region13: #{tpu_custom_call.1} parent=1 // pred_fallthru
      _
    // Predicated region
    $region14: #{tpu_custom_call.1} parent=1 // pred_check
      _
    $region15: #{tpu_custom_call.1} parent=1 // pred_check_branch
      %58 = sbr.rel (0) target = $region17
    $region16: #{tpu_custom_call.1} parent=1 // pred_region
      %59 = dma.done [#allocation4], 256
    $region17: #{tpu_custom_call.1} parent=1 // pred_fallthru
      _
    %60 = vsyncpa [#allocation3], 1
    %61 = vsyncpa [#allocation4], 1

</llo_original>
